<compile_context>
chip_gen: v7x
topology: tpu7x:2x2x1
jax: 0.10.0
libtpu: 0.0.40
codegen_flags: <defaults>
</compile_context>

<pallas_src>
import jax
import jax.numpy as jnp
from jax.experimental import pallas as pl
from jax.experimental.pallas import tpu as pltpu


# ----------------------------------------------------------------------------
# Kernel
# ----------------------------------------------------------------------------
def _dqn_kernel(x_ref, w1_ref, b1_ref, w2_ref, b2_ref, o_ref):
    # Layer 1: x @ w1 + b1, ReLU  (MXU matmul, f32 accumulation).
    h = jnp.dot(x_ref[...], w1_ref[...], preferred_element_type=jnp.float32)
    h = h + b1_ref[...].astype(jnp.float32)      # b1 is [1, 64], broadcasts over rows
    h = jnp.maximum(h, 0.0)
    # Layer 2: h @ w2 + b2. Hidden activations follow the weight dtype so bf16
    # weights take the native bf16 MXU path; accumulation stays f32.
    out = jnp.dot(h.astype(w2_ref.dtype), w2_ref[...],
                  preferred_element_type=jnp.float32)
    out = out + b2_ref[...].astype(jnp.float32)  # b2 is [1, n_actions]
    # n_actions << 128 lanes -> masked partial stores; intentionally NOT padded.
    o_ref[...] = out.astype(o_ref.dtype)


# ----------------------------------------------------------------------------
# Helpers
# ----------------------------------------------------------------------------
def _round_up(n, m):
    return -(-n // m) * m


def _physical_vmem_bytes():
    """Best-effort physical VMEM query; conservative fallbacks."""
    try:
        info = pltpu.get_tpu_info()
        for attr in ("vmem_capacity_bytes", "vmem_size_bytes", "vmem_bytes"):
            v = getattr(info, attr, None)
            if v:
                return int(v)
    except Exception:
        pass
    try:
        kind = jax.devices()[0].device_kind.lower()
        if "v7" in kind or "tpu7" in kind or kind.startswith("7"):
            return 64 << 20
    except Exception:
        pass
    return 128 << 20  # v5e / v6e


def _padded_param_vmem_bytes(arrays):
    """Lane/sublane-padded VMEM footprint of small weight/bias arrays."""
    total = 0
    for a in arrays:
        r, c = a.shape
        total += _round_up(r, 8) * _round_up(c, 128) * jnp.dtype(a.dtype).itemsize
    return total


def _xla_forward(x, w1, b1, w2, b2, out_dtype):
    """Plain-XLA path for small batches (same numerics as the kernel)."""
    h = jnp.dot(x, w1, preferred_element_type=jnp.float32) + b1.astype(jnp.float32)
    h = jnp.maximum(h, 0.0)
    out = (jnp.dot(h.astype(w2.dtype), w2, preferred_element_type=jnp.float32)
           + b2.astype(jnp.float32))
    return out.astype(out_dtype)


# ----------------------------------------------------------------------------
# Public entry point
# ----------------------------------------------------------------------------
def dqn_forward(x, w1, b1, w2, b2, *, block_rows=None, min_pallas_batch=2048):
    """Fused forward pass of the 2-layer MLP DQN.

    x  : [B, obs_size]    float32 or bfloat16
    w1 : [obs_size, 64]   float32 or bfloat16
    b1 : [1, 64]
    w2 : [64, n_actions]
    b2 : [1, n_actions]
    returns [B, n_actions] in x.dtype (f32 in -> f32 out, bf16 in -> bf16 out)

    block_rows       : optional explicit batch-tile override (rows per grid step).
    min_pallas_batch : below this batch size, use a plain XLA fusion (the
                       pallas_call dispatch is pure overhead for tiny B).
    """
    B, obs_size = x.shape
    hidden, n_actions = w2.shape
    assert w1.shape == (obs_size, hidden)

    out_dtype = x.dtype
    x_item = jnp.dtype(x.dtype).itemsize
    out_item = jnp.dtype(out_dtype).itemsize

    # Tiny batches (acting / single-env inference): XLA fuses this MLP into one
    # fusion and is strictly faster than a pallas_call dispatch + one step.
    if block_rows is None and B < min_pallas_batch:
        return _xla_forward(x, w1, b1, w2, b2, out_dtype)

    # --- generation-specific VMEM budget & tile caps -------------------------
    phys_vmem = _physical_vmem_bytes()
    if phys_vmem <= (64 << 20):          # v7x-class: 64 MiB VMEM per TensorCore
        vmem_limit = 48 << 20            # leave headroom for scratch/pipeline
        tm_hard_cap = 12288
    else:                                # v5e / v6e: 128 MiB VMEM
        vmem_limit = 96 << 20
        tm_hard_cap = 32768

    # Lane-padded VMEM bytes per batch row:
    #   x block  [tm, obs]  -> 128 lanes * x_item  * 2 buffers
    #   out blk  [tm, nact] -> 128 lanes * out_it  * 2 buffers
    #   f32 temps (h and pre-cast out) -> 2 * 128 * 4
    per_row = 128 * (2 * x_item + 2 * out_item + 2 * 4)
    w_vmem = 2 * _padded_param_vmem_bytes((w1, b1, w2, b2))  # double-buffered
    budget = vmem_limit - w_vmem - (4 << 20)                 # fixed headroom
    tm_cap = max(1024, (budget // per_row) // 8 * 8)
    tm_cap = min(tm_cap, tm_hard_cap)

    # --- batch tile selection -------------------------------------------------
    if block_rows is not None:
        tm = max(8, _round_up(min(int(block_rows), B), 8))
    else:
        # Aim for >=4 grid steps (2 TCs on v7x + pipeline overlap), but keep
        # tiles big enough to amortize the ~600-cycle per-step overhead.
        tm = _round_up(pl.cdiv(B, 4), 8)
        tm = max(tm, min(_round_up(B, 8), 4096))
    tm = min(tm, tm_cap)
    tm = max(tm, 8)

    grid = (pl.cdiv(B, tm),)   # ragged last tile is masked by Pallas (no jnp.pad)

    w_bytes = sum(int(a.size) * jnp.dtype(a.dtype).itemsize
                  for a in (w1, b1, w2, b2))
    cost = pl.CostEstimate(
        flops=2 * B * (obs_size * hidden + hidden * n_actions),
        transcendentals=0,
        bytes_accessed=x_item * B * obs_size + w_bytes + out_item * B * n_actions,
    )

    out = pl.pallas_call(
        _dqn_kernel,
        out_shape=jax.ShapeDtypeStruct((B, n_actions), out_dtype),
        grid=grid,
        in_specs=[
            pl.BlockSpec((tm, obs_size), lambda i: (i, 0)),
            # Constant index maps: weights/biases stay resident in VMEM.
            pl.BlockSpec((obs_size, hidden), lambda i: (0, 0)),
            pl.BlockSpec((1, hidden), lambda i: (0, 0)),
            pl.BlockSpec((hidden, n_actions), lambda i: (0, 0)),
            pl.BlockSpec((1, n_actions), lambda i: (0, 0)),
        ],
        out_specs=pl.BlockSpec((tm, n_actions), lambda i: (i, 0)),
        compiler_params=pltpu.CompilerParams(
            dimension_semantics=("parallel",),   # v7x: shard batch over 2 TCs
            vmem_limit_bytes=int(vmem_limit),
        ),
        cost_estimate=cost,
    )(x, w1, b1, w2, b2)

    return out


# ----------------------------------------------------------------------------
# Params / reference
# ----------------------------------------------------------------------------
def init_dqn_params(key, obs_size, n_actions, hidden=64, dtype=jnp.float32):
    """Deterministic synthetic init (PyTorch-style uniform fan-in bounds)."""
    k1, k2, k3, k4 = jax.random.split(key, 4)
    bound1 = 1.0 / jnp.sqrt(obs_size)
    bound2 = 1.0 / jnp.sqrt(hidden)
    w1 = jax.random.uniform(k1, (obs_size, hidden), jnp.float32, -bound1, bound1)
    b1 = jax.random.uniform(k2, (1, hidden), jnp.float32, -bound1, bound1)
    w2 = jax.random.uniform(k3, (hidden, n_actions), jnp.float32, -bound2, bound2)
    b2 = jax.random.uniform(k4, (1, n_actions), jnp.float32, -bound2, bound2)
    return tuple(p.astype(dtype) for p in (w1, b1, w2, b2))


def _ref_forward(x, w1, b1, w2, b2):
    xf = x.astype(jnp.float32)
    h = jnp.maximum(xf @ w1.astype(jnp.float32) + b1.astype(jnp.float32), 0.0)
    return h @ w2.astype(jnp.float32) + b2.astype(jnp.float32)


# ----------------------------------------------------------------------------
# Self-test
# ----------------------------------------------------------------------------
if __name__ == "__main__":
    obs_size = 16      # flattened gridworld observation
    n_actions = 4      # up / down / left / right

    key = jax.random.PRNGKey(0)
    key_x, key_p = jax.random.split(key)
    w1, b1, w2, b2 = init_dqn_params(key_p, obs_size, n_actions)

    # 1) Small batch, default path (XLA fallback) — exact vs PyTorch math.
    x_small = jax.random.normal(key_x, (8, obs_size), dtype=jnp.float32)
    out = jax.block_until_ready(dqn_forward(x_small, w1, b1, w2, b2))
    ref = _ref_forward(x_small, w1, b1, w2, b2)
    assert out.shape == (8, n_actions)
    assert jnp.allclose(out, ref, atol=1e-5, rtol=1e-5)

    # 2) Same small batch forced through the Pallas kernel (single tile).
    out_k = jax.block_until_ready(
        dqn_forward(x_small, w1, b1, w2, b2, min_pallas_batch=0))
    assert out_k.shape == (8, n_actions)
    assert jnp.allclose(out_k, ref, atol=1e-5, rtol=1e-5)

    # 3) Multi-step grid with a ragged (masked) last tile: B=4099, tm=1024
    #    -> 5 grid steps, last one 3/1024 valid rows, no jnp.pad anywhere.
    x_big = jax.random.normal(jax.random.PRNGKey(1), (4099, obs_size),
                              dtype=jnp.float32)
    out_big = jax.block_until_ready(
        dqn_forward(x_big, w1, b1, w2, b2, block_rows=1024))
    ref_big = _ref_forward(x_big, w1, b1, w2, b2)
    assert out_big.shape == (4099, n_actions)
    assert jnp.allclose(out_big, ref_big, atol=1e-5, rtol=1e-5)

    # 4) bf16 inputs/weights (halves HBM traffic on the dominant x stream and
    #    the write stream); f32 accumulation. Output dtype follows input (bf16).
    xb = jax.random.normal(jax.random.PRNGKey(2), (4096, obs_size),
                           dtype=jnp.float32).astype(jnp.bfloat16)
    pb = [p.astype(jnp.bfloat16) for p in (w1, b1, w2, b2)]
    out_bf = jax.block_until_ready(
        dqn_forward(xb, *pb, block_rows=2048))
    assert out_bf.dtype == jnp.bfloat16 and out_bf.shape == (4096, n_actions)
    ref_bf = _ref_forward(xb, *pb)
    assert jnp.allclose(out_bf.astype(jnp.float32), ref_bf, atol=5e-2, rtol=5e-2)

    # 5) Auto tile selection on a moderately large batch (Pallas path).
    x_auto = jax.random.normal(jax.random.PRNGKey(3), (8192, obs_size),
                               dtype=jnp.float32)
    out_auto = jax.block_until_ready(dqn_forward(x_auto, w1, b1, w2, b2))
    ref_auto = _ref_forward(x_auto, w1, b1, w2, b2)
    assert out_auto.shape == (8192, n_actions)
    assert jnp.allclose(out_auto, ref_auto, atol=1e-5, rtol=1e-5)

    print("KERNEL_OK")
</pallas_src>

<mosaic_0001>
module attributes {stable_mosaic.version = 11 : i64} {
  func.func @_dqn_kernel(%arg0: i32, %arg1: memref<8x16xf32, #tpu.memory_space<vmem>>, %arg2: memref<16x64xf32, #tpu.memory_space<vmem>>, %arg3: memref<1x64xf32, #tpu.memory_space<vmem>>, %arg4: memref<64x4xf32, #tpu.memory_space<vmem>>, %arg5: memref<1x4xf32, #tpu.memory_space<vmem>>, %arg6: memref<8x4xf32, #tpu.memory_space<vmem>>) attributes {dimension_semantics = [#tpu.dimension_semantics<parallel>], iteration_bounds = array<i64: 1>, scalar_prefetch = 0 : i64, scratch_operands = 0 : i64, tpu.core_type = #tpu.core_type<tc>, window_params = [{transform_indices = @transform_0, window_bounds = array<i64: 8, 16>}, {pipeline_mode = #tpu.pipeline_mode<synchronous>, transform_indices = @transform_1, window_bounds = array<i64: 16, 64>}, {pipeline_mode = #tpu.pipeline_mode<synchronous>, transform_indices = @transform_2, window_bounds = array<i64: 1, 64>}, {pipeline_mode = #tpu.pipeline_mode<synchronous>, transform_indices = @transform_3, window_bounds = array<i64: 64, 4>}, {pipeline_mode = #tpu.pipeline_mode<synchronous>, transform_indices = @transform_4, window_bounds = array<i64: 1, 4>}, {transform_indices = @transform_5, window_bounds = array<i64: 8, 4>}]} {
    %c0 = arith.constant 0 : index
    %c0_0 = arith.constant 0 : index
    %0 = vector.load %arg1[%c0, %c0_0] : memref<8x16xf32, #tpu.memory_space<vmem>>, vector<8x16xf32>
    %c0_1 = arith.constant 0 : index
    %c0_2 = arith.constant 0 : index
    %1 = vector.load %arg2[%c0_1, %c0_2] : memref<16x64xf32, #tpu.memory_space<vmem>>, vector<16x64xf32>
    %cst = arith.constant dense<0.000000e+00> : vector<8x64xf32>
    %2 = tpu.matmul %0, %1, %cst {dimension_numbers = #tpu.dot_dimension_numbers<[1], [0], [0], [1], [0, 0, 1, 1], [], []>} : vector<8x16xf32>, vector<16x64xf32>, vector<8x64xf32> -> vector<8x64xf32>
    %c0_3 = arith.constant 0 : index
    %c0_4 = arith.constant 0 : index
    %3 = vector.load %arg3[%c0_3, %c0_4] : memref<1x64xf32, #tpu.memory_space<vmem>>, vector<1x64xf32>
    %4 = vector.broadcast %3 : vector<1x64xf32> to vector<8x64xf32>
    %5 = arith.addf %2, %4 : vector<8x64xf32>
    %cst_5 = arith.constant 0.000000e+00 : f32
    %6 = vector.broadcast %cst_5 : f32 to vector<8x64xf32>
    %7 = arith.maximumf %5, %6 : vector<8x64xf32>
    %c0_6 = arith.constant 0 : index
    %c0_7 = arith.constant 0 : index
    %8 = vector.load %arg4[%c0_6, %c0_7] : memref<64x4xf32, #tpu.memory_space<vmem>>, vector<64x4xf32>
    %cst_8 = arith.constant dense<0.000000e+00> : vector<8x4xf32>
    %9 = tpu.matmul %7, %8, %cst_8 {dimension_numbers = #tpu.dot_dimension_numbers<[1], [0], [0], [1], [0, 0, 1, 1], [], []>} : vector<8x64xf32>, vector<64x4xf32>, vector<8x4xf32> -> vector<8x4xf32>
    %c0_9 = arith.constant 0 : index
    %c0_10 = arith.constant 0 : index
    %10 = vector.load %arg5[%c0_9, %c0_10] : memref<1x4xf32, #tpu.memory_space<vmem>>, vector<1x4xf32>
    %11 = vector.broadcast %10 : vector<1x4xf32> to vector<8x4xf32>
    %12 = arith.addf %9, %11 : vector<8x4xf32>
    %c0_11 = arith.constant 0 : index
    %c0_12 = arith.constant 0 : index
    %13 = vector.load %arg6[%c0_11, %c0_12] : memref<8x4xf32, #tpu.memory_space<vmem>>, vector<8x4xf32>
    tpu.vector_store %arg6[%c0_11, %c0_12], %12 {strides = array<i32>} : memref<8x4xf32, #tpu.memory_space<vmem>>, vector<8x4xf32>,
    return
  }
  func.func @transform_0(%arg0: i32) -> (i32, i32) {
    %c0_i32 = arith.constant 0 : i32
    %c0_i32_0 = arith.constant 0 : i32
    return %arg0, %c0_i32 : i32, i32
  }
  func.func @transform_1(%arg0: i32) -> (i32, i32) {
    %c0_i32 = arith.constant 0 : i32
    %c0_i32_0 = arith.constant 0 : i32
    %c0_i32_1 = arith.constant 0 : i32
    return %c0_i32, %c0_i32_0 : i32, i32
  }
  func.func @transform_2(%arg0: i32) -> (i32, i32) {
    %c0_i32 = arith.constant 0 : i32
    %c0_i32_0 = arith.constant 0 : i32
    %c0_i32_1 = arith.constant 0 : i32
    return %c0_i32, %c0_i32_0 : i32, i32
  }
  func.func @transform_3(%arg0: i32) -> (i32, i32) {
    %c0_i32 = arith.constant 0 : i32
    %c0_i32_0 = arith.constant 0 : i32
    %c0_i32_1 = arith.constant 0 : i32
    return %c0_i32, %c0_i32_0 : i32, i32
  }
  func.func @transform_4(%arg0: i32) -> (i32, i32) {
    %c0_i32 = arith.constant 0 : i32
    %c0_i32_0 = arith.constant 0 : i32
    %c0_i32_1 = arith.constant 0 : i32
    return %c0_i32, %c0_i32_0 : i32, i32
  }
  func.func @transform_5(%arg0: i32) -> (i32, i32) {
    %c0_i32 = arith.constant 0 : i32
    %c0_i32_0 = arith.constant 0 : i32
    return %arg0, %c0_i32 : i32, i32
  }
}

</mosaic_0001>

<llo_original>
// kernel: tpu_custom_call.1
$region0: #{tpu_custom_call.1}
  #allocation0 [shape = 'u32[]', space=smem, size = 0x4, offset = 0x4, fixed_abs, tag = 'smem constant byte address 0x4 - core index']
  #allocation1 [shape = 'u32[144,128]{1,0:T(1,128)}', space=vmem, size = 0x12000, scoped, tag = 'internal scratch']
  %s0 = inlined_call_operand.hbm [shape: f32[8,16], index: 0, kind: input, shape index: {}]
  %s1 = inlined_call_operand.hbm [shape: f32[16,64], index: 1, kind: input, shape index: {}]
  %s2 = inlined_call_operand.hbm [shape: f32[1,64], index: 2, kind: input, shape index: {}]
  %s3 = inlined_call_operand.hbm [shape: f32[64,4], index: 3, kind: input, shape index: {}]
  %s4 = inlined_call_operand.hbm [shape: f32[1,4], index: 4, kind: input, shape index: {}]
  %s5 = inlined_call_operand.hbm [shape: f32[8,4], index: 5, kind: output, shape index: {}]
  %s6 = sld [smem:[#allocation0]]
  $region50: #{tpu_custom_call.1} parent=0
    _
  %s8 = ssub.s32 1, %s6
  %s9 = scalar_select 0, %s8, %s6
  $region1: #{tpu_custom_call.1} parent=0
    #allocation2 [shape = 'u8[4096]{0}', space=vmem, size = 0x1000, scoped, tag = 'input window, operand 0, single buffered']
    #allocation3 [shape = 's32[1]{0}', space=sflag, size = 0x4, scoped, tag = 'scoped memory for tpu_custom_call.1']
    #allocation4 [shape = 's32[1]{0}', space=sflag, size = 0x4, scoped, tag = 'scoped memory for tpu_custom_call.1']
    #allocation5 [shape = 'u8[8192]{0}', space=vmem, size = 0x2000, scoped, tag = 'input window, operand 1, single buffered']
    #allocation6 [shape = 's32[1]{0}', space=sflag, size = 0x4, scoped, tag = 'scoped memory for tpu_custom_call.1']
    #allocation7 [shape = 'u8[512]{0}', space=vmem, size = 0x400, scoped, tag = 'input window, operand 2, single buffered']
    #allocation8 [shape = 'u8[32768]{0}', space=vmem, size = 0x8000, scoped, tag = 'input window, operand 3, single buffered']
    #allocation9 [shape = 's32[1]{0}', space=sflag, size = 0x4, scoped, tag = 'scoped memory for tpu_custom_call.1']
    #allocation10 [shape = 'u8[512]{0}', space=vmem, size = 0x400, scoped, tag = 'input window, operand 4, single buffered']
    #allocation11 [shape = 'u8[4096]{0}', space=vmem, size = 0x1000, scoped, tag = 'output window, operand 0, single buffered']
    %10 = vsyncpa [#allocation3], 0
    %11 = vsyncpa [#allocation6], 0
    %12 = vsyncpa [#allocation9], 0
    %13 = vsyncpa [#allocation4], 0
    // Predicated region
    $region2: #{tpu_custom_call.1} parent=1 // pred_check
      _
    $region3: #{tpu_custom_call.1} parent=1 // pred_check_branch
      %15 = sbr.rel (0) target = $region5
    $region4: #{tpu_custom_call.1} parent=1 // pred_region
      %s17 = ssub.s32 128, 128
      %18 = vsyncadd [#allocation3], %s17
      %s20 = sshll.u32 [#allocation2], 4
      %s21 = int_to_ptr.vmem [resolvable:$true] %s20
      %23 = dma.hbm_to_vmem [thread:$0]  %s0, 128, %s21, [#allocation3]
    $region5: #{tpu_custom_call.1} parent=1 // pred_fallthru
      _
    // Predicated region
    $region6: #{tpu_custom_call.1} parent=1 // pred_check
      _
    $region7: #{tpu_custom_call.1} parent=1 // pred_check_branch
      %25 = sbr.rel (0) target = $region9
    $region8: #{tpu_custom_call.1} parent=1 // pred_region
      %s27 = ssub.s32 256, 256
      %28 = vsyncadd [#allocation6], %s27
      %s29 = sshll.u32 [#allocation5], 4
      %s30 = int_to_ptr.vmem [resolvable:$true] %s29
      %35 = dma.hbm_to_vmem [thread:$0]  %s1, 256, %s30, [#allocation6], 128, 128, 8
    $region9: #{tpu_custom_call.1} parent=1 // pred_fallthru
      _
    // Predicated region
    $region10: #{tpu_custom_call.1} parent=1 // pred_check
      _
    $region11: #{tpu_custom_call.1} parent=1 // pred_check_branch
      %37 = sbr.rel (0) target = $region13
    $region12: #{tpu_custom_call.1} parent=1 // pred_region
      %s39 = ssub.s32 16, 16
      %40 = vsyncadd [#allocation6], %s39
      %s42 = sshll.u32 [#allocation7], 4
      %s43 = int_to_ptr.vmem [resolvable:$true] %s42
      %45 = dma.hbm_to_vmem [thread:$0]  %s2, 16, %s43, [#allocation6]
    $region13: #{tpu_custom_call.1} parent=1 // pred_fallthru
      _
    // Predicated region
    $region14: #{tpu_custom_call.1} parent=1 // pred_check
      _
    $region15: #{tpu_custom_call.1} parent=1 // pred_check_branch
      %47 = sbr.rel (0) target = $region17
    $region16: #{tpu_custom_call.1} parent=1 // pred_region
      %s49 = ssub.s32 1024, 1024
      %50 = vsyncadd [#allocation9], %s49
      %s51 = sshll.u32 [#allocation8], 4
      %s52 = int_to_ptr.vmem [resolvable:$true] %s51
      %57 = dma.hbm_to_vmem [thread:$0]  %s3, 1024, %s52, [#allocation9], 128, 128, 8
    $region17: #{tpu_custom_call.1} parent=1 // pred_fallthru
      _
    // Predicated region
    $region18: #{tpu_custom_call.1} parent=1 // pred_check
      _
    $region19: #{tpu_custom_call.1} parent=1 // pred_check_branch
      %59 = sbr.rel (0) target = $region21
    $region20: #{tpu_custom_call.1} parent=1 // pred_region
      %s61 = ssub.s32 16, 16
      %62 = vsyncadd [#allocation9], %s61
      %s64 = sshll.u32 [#allocation10], 4
      %s65 = int_to_ptr.vmem [resolvable:$true] %s64
      %67 = dma.hbm_to_vmem [thread:$0]  %s4, 16, %s65, [#allocation9]
    $region21: #{tpu_custom_call.1} parent=1 // pred_fallthru
      _
    // Predicated region
    $region22: #{tpu_custom_call.1} parent=1 // pred_check
      _
    $region23: #{tpu_custom_call.1} parent=1 // pred_check_branch
      %69 = sbr.rel (0) target = $region25
    $region24: #{tpu_custom_call.1} parent=1 // pred_region
      %70 = dma.done [#allocation3], 128
    $region25: #{tpu_custom_call.1} parent=1 // pred_fallthru
      _
    // Predicated region
    $region26: #{tpu_custom_call.1} parent=1 // pred_check
      _
    $region27: #{tpu_custom_call.1} parent=1 // pred_check_branch
      %72 = sbr.rel (0) target = $region29
    $region28: #{tpu_custom_call.1} parent=1 // pred_region
      %73 = dma.done [#allocation6], 256
    $region29: #{tpu_custom_call.1} parent=1 // pred_fallthru
      _
    // Predicated region
    $region30: #{tpu_custom_call.1} parent=1 // pred_check
      _
    $region31: #{tpu_custom_call.1} parent=1 // pred_check_branch
      %75 = sbr.rel (0) target = $region33
    $region32: #{tpu_custom_call.1} parent=1 // pred_region
      %76 = dma.done [#allocation6], 16
    $region33: #{tpu_custom_call.1} parent=1 // pred_fallthru
      _
    // Predicated region
    $region34: #{tpu_custom_call.1} parent=1 // pred_check
      _
    $region35: #{tpu_custom_call.1} parent=1 // pred_check_branch
      %78 = sbr.rel (0) target = $region37
    $region36: #{tpu_custom_call.1} parent=1 // pred_region
      %79 = dma.done [#allocation9], 1024
    $region37: #{tpu_custom_call.1} parent=1 // pred_fallthru
      _
    // Predicated region
    $region38: #{tpu_custom_call.1} parent=1 // pred_check
      _
    $region39: #{tpu_custom_call.1} parent=1 // pred_check_branch
      %81 = sbr.rel (0) target = $region41
    $region40: #{tpu_custom_call.1} parent=1 // pred_region
      %82 = dma.done [#allocation9], 16
    $region41: #{tpu_custom_call.1} parent=1 // pred_fallthru
      _
    %v83 = vld [vmem:[#allocation2] sm:$0xff]
    %v84 = vld [vmem:[#allocation5] sm:$0xff]
    %v85 = vld [vmem:[#allocation5 + $0x8] sm:$0xff]
    %v86 = vld [vmem:[#allocation7] sm:$0x1]
    %v88 = vlaneseq
    %v89 = vshrl.u32 %v88, 7
    %v90 = vsub.s32 0, %v89
    %v91 = vrot.slane %v86, %v90
    %vm93 = vcmask 130048
    %v95 = vsel %vm93, %v83, 0
    %97 = vmatprep.subr.mxu0 0.0
    %98 = vmatpush1.msra.mxu0 %v84
    %99 = vmatprep.subr.mxu0 0.0
    %100 = vmatpush1.msra.mxu0 %v85
    %101 = vmatprep.subr.mxu0 0.0
    %102 = vmatpush1.msra.mxu0 0.0
    %103 = vmatprep.subr.mxu0 0.0
    %104 = vmatpush1.msra.mxu0 0.0
    %105 = vmatprep.subr.mxu0 0.0
    %106 = vmatpush1.msra.mxu0 0.0
    %107 = vmatprep.subr.mxu0 0.0
    %108 = vmatpush1.msra.mxu0 0.0
    %109 = vmatprep.subr.mxu0 0.0
    %110 = vmatpush1.msra.mxu0 0.0
    %111 = vmatprep.subr.mxu0 0.0
    %112 = vmatpush1.msra.mxu0 0.0
    %113 = vmatprep.subr.mxu0 0.0
    %114 = vmatpush1.msra.mxu0 0.0
    %115 = vmatprep.subr.mxu0 0.0
    %116 = vmatpush1.msra.mxu0 0.0
    %117 = vmatprep.subr.mxu0 0.0
    %118 = vmatpush1.msra.mxu0 0.0
    %119 = vmatprep.subr.mxu0 0.0
    %120 = vmatpush1.msra.mxu0 0.0
    %121 = vmatprep.subr.mxu0 0.0
    %122 = vmatpush1.msra.mxu0 0.0
    %123 = vmatprep.subr.mxu0 0.0
    %124 = vmatpush1.msra.mxu0 0.0
    %125 = vmatprep.subr.mxu0 0.0
    %126 = vmatpush1.msra.mxu0 0.0
    %127 = vmatprep.subr.mxu0 0.0
    %128 = vmatpush1.msra.mxu0 0.0
    %129 = vmatprep.subr.mxu0 0.0
    %130 = vmatpush1.msra.mxu0 0.0
    %131 = vmatprep.subr.mxu0 0.0
    %132 = vmatpush1.msra.mxu0 0.0
    %133 = vmatprep.subr.mxu0 0.0
    %134 = vmatpush1.msra.mxu0 0.0
    %135 = vmatprep.subr.mxu0 0.0
    %136 = vmatpush1.msra.mxu0 0.0
    %137 = vmatprep.subr.mxu0 0.0
    %138 = vmatpush1.msra.mxu0 0.0
    %139 = vmatprep.subr.mxu0 0.0
    %140 = vmatpush1.msra.mxu0 0.0
    %141 = vmatprep.subr.mxu0 0.0
    %142 = vmatpush1.msra.mxu0 0.0
    %143 = vmatprep.subr.mxu0 0.0
    %144 = vmatpush1.msra.mxu0 0.0
    %145 = vmatprep.subr.mxu0 0.0
    %146 = vmatpush1.msra.mxu0 0.0
    %147 = vmatprep.subr.mxu0 0.0
    %148 = vmatpush1.msra.mxu0 0.0
    %149 = vmatprep.subr.mxu0 0.0
    %150 = vmatpush1.msra.mxu0 0.0
    %151 = vmatprep.subr.mxu0 0.0
    %152 = vmatpush1.msra.mxu0 0.0
    %153 = vmatprep.subr.mxu0 0.0
    %154 = vmatpush1.msra.mxu0 0.0
    %155 = vmatprep.subr.mxu0 0.0
    %156 = vmatpush1.msra.mxu0 0.0
    %157 = vmatprep.subr.mxu0 0.0
    %158 = vmatpush1.msra.mxu0 0.0
    %159 = vmatprep.subr.mxu0 0.0
    %160 = vmatpush1.msra.mxu0 0.0
    %161 = vmatprep.mubr.f32.mxu0 0.0
    %162 = vmatmul.mubr.f32.gmra.mrb[0].mxu0 %v95
    %v163 = vpop.f32.mrb[0].mxu0
    %v164 = vadd.f32 %v91, %v163
    %v165 = vpop.f32.mrb[0].mxu0
    %166 = vdwg.mxu0
    %v167 = vmax.f32 %v164, 0.0
    %v168 = vld [vmem:[#allocation8] sm:$0xff]
    %v169 = vld [vmem:[#allocation8 + $0x8] sm:$0xff]
    %v170 = vld [vmem:[#allocation8 + $0x10] sm:$0xff]
    %v171 = vld [vmem:[#allocation8 + $0x18] sm:$0xff]
    %v172 = vld [vmem:[#allocation8 + $0x20] sm:$0xff]
    %v173 = vld [vmem:[#allocation8 + $0x28] sm:$0xff]
    %v174 = vld [vmem:[#allocation8 + $0x30] sm:$0xff]
    %v175 = vld [vmem:[#allocation8 + $0x38] sm:$0xff]
    %v176 = vld [vmem:[#allocation10] sm:$0x1]
    %v178 = vlaneseq
    %v179 = vshrl.u32 %v178, 7
    %v180 = vsub.s32 0, %v179
    %v181 = vrot.slane %v176, %v180
    %vm183 = vcmask 523264
    %v185 = vsel %vm183, %v167, 0
    %187 = vmatprep.subr.mxu0 0.0
    %188 = vmatpush1.msra.mxu0 %v168
    %189 = vmatprep.subr.mxu0 0.0
    %190 = vmatpush1.msra.mxu0 %v169
    %191 = vmatprep.subr.mxu0 0.0
    %192 = vmatpush1.msra.mxu0 %v170
    %193 = vmatprep.subr.mxu0 0.0
    %194 = vmatpush1.msra.mxu0 %v171
    %195 = vmatprep.subr.mxu0 0.0
    %196 = vmatpush1.msra.mxu0 %v172
    %197 = vmatprep.subr.mxu0 0.0
    %198 = vmatpush1.msra.mxu0 %v173
    %199 = vmatprep.subr.mxu0 0.0
    %200 = vmatpush1.msra.mxu0 %v174
    %201 = vmatprep.subr.mxu0 0.0
    %202 = vmatpush1.msra.mxu0 %v175
    %203 = vmatprep.subr.mxu0 0.0
    %204 = vmatpush1.msra.mxu0 0.0
    %205 = vmatprep.subr.mxu0 0.0
    %206 = vmatpush1.msra.mxu0 0.0
    %207 = vmatprep.subr.mxu0 0.0
    %208 = vmatpush1.msra.mxu0 0.0
    %209 = vmatprep.subr.mxu0 0.0
    %210 = vmatpush1.msra.mxu0 0.0
    %211 = vmatprep.subr.mxu0 0.0
    %212 = vmatpush1.msra.mxu0 0.0
    %213 = vmatprep.subr.mxu0 0.0
    %214 = vmatpush1.msra.mxu0 0.0
    %215 = vmatprep.subr.mxu0 0.0
    %216 = vmatpush1.msra.mxu0 0.0
    %217 = vmatprep.subr.mxu0 0.0
    %218 = vmatpush1.msra.mxu0 0.0
    %219 = vmatprep.subr.mxu0 0.0
    %220 = vmatpush1.msra.mxu0 0.0
    %221 = vmatprep.subr.mxu0 0.0
    %222 = vmatpush1.msra.mxu0 0.0
    %223 = vmatprep.subr.mxu0 0.0
    %224 = vmatpush1.msra.mxu0 0.0
    %225 = vmatprep.subr.mxu0 0.0
    %226 = vmatpush1.msra.mxu0 0.0
    %227 = vmatprep.subr.mxu0 0.0
    %228 = vmatpush1.msra.mxu0 0.0
    %229 = vmatprep.subr.mxu0 0.0
    %230 = vmatpush1.msra.mxu0 0.0
    %231 = vmatprep.subr.mxu0 0.0
    %232 = vmatpush1.msra.mxu0 0.0
    %233 = vmatprep.subr.mxu0 0.0
    %234 = vmatpush1.msra.mxu0 0.0
    %235 = vmatprep.subr.mxu0 0.0
    %236 = vmatpush1.msra.mxu0 0.0
    %237 = vmatprep.subr.mxu0 0.0
    %238 = vmatpush1.msra.mxu0 0.0
    %239 = vmatprep.subr.mxu0 0.0
    %240 = vmatpush1.msra.mxu0 0.0
    %241 = vmatprep.subr.mxu0 0.0
    %242 = vmatpush1.msra.mxu0 0.0
    %243 = vmatprep.subr.mxu0 0.0
    %244 = vmatpush1.msra.mxu0 0.0
    %245 = vmatprep.subr.mxu0 0.0
    %246 = vmatpush1.msra.mxu0 0.0
    %247 = vmatprep.subr.mxu0 0.0
    %248 = vmatpush1.msra.mxu0 0.0
    %249 = vmatprep.subr.mxu0 0.0
    %250 = vmatpush1.msra.mxu0 0.0
    %251 = vmatprep.mubr.f32.mxu0 0.0
    %252 = vmatmul.mubr.f32.gmra.mrb[0].mxu0 %v185
    %v253 = vpop.f32.mrb[0].mxu0
    %v254 = vadd.f32 %v181, %v253
    %v255 = vpop.f32.mrb[0].mxu0
    %256 = vdwg.mxu0
    %vm257 = vcmask 31744
    %258 = vst.msk [vmem:[#allocation11] sm:$0xff] %vm257, %v254
    // Predicated region
    $region42: #{tpu_custom_call.1} parent=1 // pred_check
      _
    $region43: #{tpu_custom_call.1} parent=1 // pred_check_branch
      %260 = sbr.rel (0) target = $region45
    $region44: #{tpu_custom_call.1} parent=1 // pred_region
      %s262 = ssub.s32 128, 128
      %263 = vsyncadd [#allocation4], %s262
      %s265 = sshll.u32 [#allocation11], 4
      %s266 = int_to_ptr.vmem [resolvable:$true] %s265
      %268 = dma.vmem_to_hbm [thread:$0]  %s266, 128, %s5, [#allocation4]
    $region45: #{tpu_custom_call.1} parent=1 // pred_fallthru
      _
    // Predicated region
    $region46: #{tpu_custom_call.1} parent=1 // pred_check
      _
    $region47: #{tpu_custom_call.1} parent=1 // pred_check_branch
      %270 = sbr.rel (0) target = $region49
    $region48: #{tpu_custom_call.1} parent=1 // pred_region
      %271 = dma.done [#allocation4], 128
    $region49: #{tpu_custom_call.1} parent=1 // pred_fallthru
      _
    %272 = vsyncpa [#allocation3], 1
    %273 = vsyncpa [#allocation6], 1
    %274 = vsyncpa [#allocation9], 1
    %275 = vsyncpa [#allocation4], 1

</llo_original>
